<compile_context>
chip_gen: v6e
topology: v6e:2x2x1
jax: 0.10.0
libtpu: 0.0.40
codegen_flags: <defaults>
</compile_context>

<pallas_src>
import functools

import numpy as np

import jax
import jax.numpy as jnp
from jax import lax
from jax.experimental import pallas as pl
from jax.experimental.pallas import tpu as pltpu

# ----- synthetic dataset config (stands in for channel_list / conv_list / ...)
CHANNEL = [8, 16, 32, 256, 10]      # channel_list[data]  (last entry = classes)
CONV_K, CONV_S, CONV_P = 3, 1, 1    # conv_list[data]     (kernel, stride, pad)
MAXP_K, MAXP_S, MAXP_P = 2, 2, 0    # maxp_list / first_maxp_list
IN_SHAPE = (2, 1, 16, 16)           # get_data_size -> (B, 1, H, W), NCHW
SUB_NUMBER = 4
BN_EPS = 1e-5

_VMEM_SPEC = pl.BlockSpec(memory_space=pltpu.MemorySpace.VMEM)
_TAP_OFFSETS = [(kh - 1, kw - 1) for kh in range(3) for kw in range(3)]


def get_feature_map_size(h, w, idex_layer):
    # GetFeatureMapSize(..., padding=True) with 2x2/s2/p0 pooling
    for _ in range(idex_layer):
        h = (h - MAXP_K + MAXP_P * 2 + MAXP_S) // MAXP_S
        w = (w - MAXP_K + MAXP_P * 2 + MAXP_S) // MAXP_S
    return h, w


# --------------------------------------------------------------------------
# Trace-time constant tables (hoisted out of the kernel per perf review)
# --------------------------------------------------------------------------
def _tap_masks(batch, cin, h, w):
    """(9*Cin, B*h*w) 0/1 validity mask, tap-major over the K axis.

    Lane L encodes (b, y, x) = (L // (h*w), (L % (h*w)) // w, L % w).  A tap
    (dh, dw) is valid iff (y+dh, x+dw) stays inside the image; this also kills
    every lane whose rotation wrapped across a batch/image boundary.
    """
    size = batch * h * w
    lane = np.arange(size)
    y = (lane % (h * w)) // w
    x = lane % w
    rows = []
    for dh, dw in _TAP_OFFSETS:
        valid = ((y + dh >= 0) & (y + dh < h) & (x + dw >= 0) & (x + dw < w))
        rows.append(np.broadcast_to(valid.astype(np.float32), (cin, size)))
    return jnp.asarray(np.concatenate(rows, axis=0))


def _pool_select(batch, h, w):
    """(B*h*w, B*ho*wo) 0/1 matrix compacting the MaxPool anchor lanes."""
    ho, wo = h // 2, w // 2
    size, osize = batch * h * w, batch * ho * wo
    src = np.arange(size)[:, None]
    dst = np.arange(osize)[None, :]
    b = dst // (ho * wo)
    rem = dst % (ho * wo)
    anchor = b * (h * w) + 2 * (rem // wo) * w + 2 * (rem % wo)
    return jnp.asarray((src == anchor).astype(np.float32), dtype=jnp.bfloat16)


# --------------------------------------------------------------------------
# Fused hierarchical kernel: 3 x (Conv3x3 + BN(eval) + ReLU + MaxPool 2x2)
# --------------------------------------------------------------------------
def _rotate_lanes(a, d):
    """out[:, s] = a[:, (s + d) % size]; d is a static int.

    Uses the XLU lane-rotation (pltpu.roll) when the slab is (8,128)-aligned;
    otherwise falls back to a tiny circular lane concat (proven-lowering path
    for the layer-3-sized slabs).  Wrapped lanes are always masked / discarded
    by the callers, so circular semantics are exact.
    """
    size = a.shape[-1]
    d = d % size
    if d == 0:
        return a
    if size % 128 == 0 and a.shape[0] % 8 == 0:
        return pltpu.roll(a, size - d, axis=1)        # roll by -d (mod size)
    return jnp.concatenate([a[:, d:], a[:, :d]], axis=1)


def _make_fused_kernel(layer_dims):
    """layer_dims: tuple of (cin, h, w) per conv block (static Python ints)."""
    n = len(layer_dims)

    def kernel(x_ref, *refs):
        param_refs = refs[: 4 * n]
        out_refs = refs[4 * n: 5 * n]
        tap_refs = refs[5 * n:]
        act = x_ref[...].astype(jnp.float32)               # (Cin0, B*H*W)
        for layer, (cin, h, w) in enumerate(layer_dims):
            w_ref, shift_ref, mask_ref, sel_ref = param_refs[4 * layer: 4 * layer + 4]
            taps_ref = tap_refs[layer]

            # im2col: 9 lane rotations assembled along the K axis (tap-major).
            for t, (dh, dw) in enumerate(_TAP_OFFSETS):
                taps_ref[pl.ds(t * cin, cin), :] = _rotate_lanes(act, dh * w + dw)
            taps = taps_ref[...] * mask_ref[...]           # hoisted boundary mask

            # Conv3x3 (+ folded BN scale) = ONE MXU matmul, K = 9*Cin.
            z = jnp.dot(w_ref[...], taps.astype(jnp.bfloat16),
                        preferred_element_type=jnp.float32)
            z = jnp.maximum(z + shift_ref[...], 0.0)       # BN shift (+bias) , ReLU

            # MaxPool 2x2/s2: max of 4 lane rotations, then anchor compaction.
            # Anchor lanes (even y, even x) never read wrapped values; wrapped
            # non-anchor lanes are zeroed by the 0/1 selection matmul.
            pooled = z
            for d in (1, w, w + 1):
                pooled = jnp.maximum(pooled, _rotate_lanes(z, d))
            act = jnp.dot(pooled.astype(jnp.bfloat16), sel_ref[...],
                          preferred_element_type=jnp.float32)   # (Cout, B*ho*wo)
            out_refs[layer][...] = act.astype(out_refs[layer].dtype)

    return kernel


def convnet3_features(params, x_nchw):
    """Hierarchical path: one fused pallas_call for all 3 conv blocks."""
    assert (CONV_K, CONV_S, CONV_P) == (3, 1, 1)
    assert (MAXP_K, MAXP_S, MAXP_P) == (2, 2, 0)
    batch, cin0, height, width = x_nchw.shape
    names = ("layer1", "layer2", "layer3")

    # Batch lives on lanes: activations are (C, B*h*w).  For Cin0 == 1 this
    # transpose+reshape is free; the kernel never sees a batch dimension.
    x_flat = jnp.transpose(x_nchw, (1, 0, 2, 3)).reshape(cin0, batch * height * width)

    inputs = [x_flat]
    out_shapes, layer_dims, scratch_shapes, couts = [], [], [], []
    cin, h, w = cin0, height, width
    for name in names:
        assert h % 2 == 0 and w % 2 == 0, "MaxPool2d(2,2) path needs even h, w"
        p = params[name]
        cout = p["w"].shape[0]
        couts.append(cout)
        size = batch * h * w

        scale = p["gamma"] / jnp.sqrt(p["rvar"] + BN_EPS)
        # Conv weight with BN scale folded in, K axis tap-major: (Cout, 9*Cin).
        w2 = (jnp.transpose(p["w"], (0, 2, 3, 1)).reshape(cout, 9 * cin)
              * scale[:, None]).astype(jnp.bfloat16)
        # Conv bias + BN running-mean/beta folded into a single shift.
        shift = ((p["b"] - p["rmean"]) * scale + p["beta"]).reshape(cout, 1)

        inputs += [w2, shift, _tap_masks(batch, cin, h, w), _pool_select(batch, h, w)]
        layer_dims.append((cin, h, w))
        scratch_shapes.append(pltpu.VMEM((9 * cin, size), jnp.float32))
        h, w = h // 2, w // 2
        out_shapes.append(jax.ShapeDtypeStruct((cout, batch * h * w), jnp.float32))
        cin = cout

    outs = pl.pallas_call(
        _make_fused_kernel(tuple(layer_dims)),
        out_shape=tuple(out_shapes),
        in_specs=[_VMEM_SPEC] * len(inputs),
        out_specs=tuple([_VMEM_SPEC] * len(names)),
        scratch_shapes=scratch_shapes,
        # Single grid step; no dimension_semantics needed (don't shard a
        # microsecond-scale kernel across v7x's 2 TensorCores).
        # TODO(synk): if the synthetic config is scaled up, tile B*h*w (lanes)
        # on a grid with dimension_semantics=("parallel", ...) and set
        # pltpu.CompilerParams(vmem_limit_bytes=...) against v7x's 64 MiB VMEM.
    )(*inputs)

    feats = []
    h, w = height, width
    for pooled, cout in zip(outs, couts):
        h, w = h // 2, w // 2
        # (Cout, B, h, w) -> NCHW: tiny XLA transpose outside the kernel.
        feats.append(jnp.transpose(pooled.reshape(cout, batch, h, w), (1, 0, 2, 3)))
    return feats


# --------------------------------------------------------------------------
# Classifier nn.Linear (y = x @ W.T + b) as a single-step kernel
# --------------------------------------------------------------------------
def _linear_kernel(x_ref, w_ref, b_ref, o_ref):
    o_ref[...] = (jnp.dot(x_ref[...], w_ref[...],
                          preferred_element_type=jnp.float32)
                  + b_ref[...]).astype(o_ref.dtype)


def linear(x_flat, w_in_out, b):
    """x_flat (M, K) @ w_in_out (K, N) + b.  Weight is stored pre-transposed."""
    m = x_flat.shape[0]
    nout = w_in_out.shape[1]
    return pl.pallas_call(
        _linear_kernel,
        out_shape=jax.ShapeDtypeStruct((m, nout), jnp.float32),
        in_specs=[_VMEM_SPEC] * 3,
        out_specs=_VMEM_SPEC,
    )(x_flat, w_in_out, b.reshape(1, nout))


# --------------------------------------------------------------------------
# Parameters + forward
# --------------------------------------------------------------------------
def init_params(key):
    ks = jax.random.split(key, 4)

    def conv_block(k, cin, cout):
        kw, kb, kg, kbe, km, kv = jax.random.split(k, 6)
        return dict(
            w=jax.random.normal(kw, (cout, cin, CONV_K, CONV_K), jnp.float32) * 0.1,
            b=jax.random.normal(kb, (cout,), jnp.float32) * 0.01,
            gamma=1.0 + 0.1 * jax.random.normal(kg, (cout,), jnp.float32),
            beta=0.05 * jax.random.normal(kbe, (cout,), jnp.float32),
            rmean=0.1 * jax.random.normal(km, (cout,), jnp.float32),
            rvar=jax.random.uniform(kv, (cout,), jnp.float32, 0.5, 1.5),
        )

    h, w = get_feature_map_size(IN_SHAPE[2], IN_SHAPE[3], SUB_NUMBER)
    in_features = CHANNEL[3] * h * w        # use_adativeavg=False branch
    kcw, kcb = jax.random.split(ks[3])
    return dict(
        layer1=conv_block(ks[0], 1, CHANNEL[0]),
        layer2=conv_block(ks[1], CHANNEL[0], CHANNEL[1]),
        layer3=conv_block(ks[2], CHANNEL[1], CHANNEL[2]),
        # nn.Linear weight stored pre-transposed: (in_features, out_features).
        cls_w_t=jax.random.normal(kcw, (in_features, CHANNEL[-1]), jnp.float32) * 0.05,
        cls_b=jax.random.normal(kcb, (CHANNEL[-1],), jnp.float32) * 0.01,
    )


@functools.partial(jax.jit, static_argnames=("hierarchical",))
def convnet3_forward(params, x_nchw, hierarchical=False):
    batch = x_nchw.shape[0]
    if hierarchical:
        return convnet3_features(params, x_nchw)
    # Original ConvNet3 forward (hierarchical=False): adaptiveAvg == Identity,
    # then x.view(B, -1), then classifier -- applied to the raw input, exactly
    # as written in the PyTorch module (layer1-3 are NOT run on this path).
    return linear(x_nchw.reshape(batch, -1), params["cls_w_t"], params["cls_b"])


# --------------------------------------------------------------------------
# Pure-JAX reference (for correctness checks only)
# --------------------------------------------------------------------------
def _reference_features(params, x_nchw):
    def block(x, p):
        y = lax.conv_general_dilated(
            x, p["w"], window_strides=(1, 1), padding=((1, 1), (1, 1)),
            dimension_numbers=("NCHW", "OIHW", "NCHW"),
            precision=lax.Precision.HIGHEST)
        y = y + p["b"][None, :, None, None]
        scale = p["gamma"] / jnp.sqrt(p["rvar"] + BN_EPS)
        y = ((y - p["rmean"][None, :, None, None])
             * scale[None, :, None, None] + p["beta"][None, :, None, None])
        y = jnp.maximum(y, 0.0)
        return lax.reduce_window(y, -jnp.inf, lax.max,
                                 (1, 1, 2, 2), (1, 1, 2, 2), "VALID")

    feats = []
    for name in ("layer1", "layer2", "layer3"):
        x_nchw = block(x_nchw, params[name])
        feats.append(x_nchw)
    return feats


if __name__ == "__main__":
    key = jax.random.PRNGKey(0)
    pkey, xkey = jax.random.split(key)
    params = init_params(pkey)
    x = jax.random.normal(xkey, IN_SHAPE, jnp.float32)   # (2, 1, 16, 16) NCHW

    # default forward (hierarchical=False): Identity -> flatten -> Linear (f32)
    logits = jax.block_until_ready(convnet3_forward(params, x))
    assert logits.shape == (IN_SHAPE[0], CHANNEL[-1])
    ref_logits = x.reshape(IN_SHAPE[0], -1) @ params["cls_w_t"] + params["cls_b"]
    assert jnp.allclose(logits, ref_logits, rtol=1e-3, atol=1e-3)

    # hierarchical forward: 3x (Conv -> BN -> ReLU -> MaxPool), NCHW outputs
    feats = jax.block_until_ready(convnet3_forward(params, x, hierarchical=True))
    assert [f.shape for f in feats] == [(2, 8, 8, 8), (2, 16, 4, 4), (2, 32, 2, 2)]
    ref_feats = _reference_features(params, x)
    for got, ref in zip(feats, ref_feats):
        # tolerance covers bf16 MXU operands (f32 accumulation) vs XLA f32 conv
        assert jnp.allclose(got, ref, rtol=3e-2, atol=3e-2), \
            float(jnp.max(jnp.abs(got - ref)))

    print("KERNEL_OK")
</pallas_src>

<mosaic_0001>
module attributes {stable_mosaic.version = 11 : i64} {
  func.func @_linear_kernel(%arg0: memref<2x256xf32, #tpu.memory_space<vmem>>, %arg1: memref<256x10xf32, #tpu.memory_space<vmem>>, %arg2: memref<1x10xf32, #tpu.memory_space<vmem>>, %arg3: memref<2x10xf32, #tpu.memory_space<vmem>>) attributes {dimension_semantics = [], scalar_prefetch = 0 : i64, scratch_operands = 0 : i64, tpu.core_type = #tpu.core_type<tc>} {
    %c0 = arith.constant 0 : index
    %c0_0 = arith.constant 0 : index
    %0 = vector.load %arg0[%c0, %c0_0] : memref<2x256xf32, #tpu.memory_space<vmem>>, vector<2x256xf32>
    %c0_1 = arith.constant 0 : index
    %c0_2 = arith.constant 0 : index
    %1 = vector.load %arg1[%c0_1, %c0_2] : memref<256x10xf32, #tpu.memory_space<vmem>>, vector<256x10xf32>
    %cst = arith.constant dense<0.000000e+00> : vector<2x10xf32>
    %2 = tpu.matmul %0, %1, %cst {dimension_numbers = #tpu.dot_dimension_numbers<[1], [0], [0], [1], [0, 0, 1, 1], [], []>} : vector<2x256xf32>, vector<256x10xf32>, vector<2x10xf32> -> vector<2x10xf32>
    %c0_3 = arith.constant 0 : index
    %c0_4 = arith.constant 0 : index
    %3 = vector.load %arg2[%c0_3, %c0_4] : memref<1x10xf32, #tpu.memory_space<vmem>>, vector<1x10xf32>
    %4 = vector.broadcast %3 : vector<1x10xf32> to vector<2x10xf32>
    %5 = arith.addf %2, %4 : vector<2x10xf32>
    %c0_5 = arith.constant 0 : index
    %c0_6 = arith.constant 0 : index
    %6 = vector.load %arg3[%c0_5, %c0_6] : memref<2x10xf32, #tpu.memory_space<vmem>>, vector<2x10xf32>
    tpu.vector_store %arg3[%c0_5, %c0_6], %5 {strides = array<i32>} : memref<2x10xf32, #tpu.memory_space<vmem>>, vector<2x10xf32>,
    return
  }
}

</mosaic_0001>

<llo_original>
// kernel: convnet3_forward.1
$region0: #{convnet3_forward.1}
  #allocation0 [shape = 'u32[]', space=smem, size = 0x4, offset = 0x4, fixed_abs, tag = 'smem constant byte address 0x4 - core index']
  #allocation1 [shape = 'u32[144,128]{1,0:T(1,128)}', space=vmem, size = 0x12000, scoped, tag = 'internal scratch']
  %s0 = inlined_call_operand.vmem [shape: f32[2,256], index: 0, kind: input, shape index: {}]
  %s1 = inlined_call_operand.vmem [shape: f32[256,10], index: 1, kind: input, shape index: {}]
  %s2 = inlined_call_operand.vmem [shape: f32[1,10], index: 2, kind: input, shape index: {}]
  %s3 = inlined_call_operand.hbm [shape: f32[2,10], index: 3, kind: output, shape index: {}]
  %s4 = sld [smem:[#allocation0]]
  $region22: #{convnet3_forward.1} parent=0
    _
  %s6 = ssub.s32 1, %s4
  %s7 = scalar_select 0, %s6, %s4
  $region1: #{convnet3_forward.1} parent=0
    #allocation2 [shape = 'u8[1024]{0}', space=vmem, size = 0x400, scoped, tag = 'output window, operand 0, single buffered']
    #allocation3 [shape = 's32[1]{0}', space=sflag, size = 0x4, scoped, tag = 'scoped memory for convnet3_forward.1']
    %8 = vsyncpa [#allocation3], 0
    // Predicated region
    $region2: #{convnet3_forward.1} parent=1 // pred_check
      _
    $region3: #{convnet3_forward.1} parent=1 // pred_check_branch
      %10 = sbr.rel (0) target = $region5
    $region4: #{convnet3_forward.1} parent=1 // pred_region
      _
    $region5: #{convnet3_forward.1} parent=1 // pred_fallthru
      _
    // Predicated region
    $region6: #{convnet3_forward.1} parent=1 // pred_check
      _
    $region7: #{convnet3_forward.1} parent=1 // pred_check_branch
      %12 = sbr.rel (0) target = $region9
    $region8: #{convnet3_forward.1} parent=1 // pred_region
      _
    $region9: #{convnet3_forward.1} parent=1 // pred_fallthru
      _
    // Predicated region
    $region10: #{convnet3_forward.1} parent=1 // pred_check
      _
    $region11: #{convnet3_forward.1} parent=1 // pred_check_branch
      %14 = sbr.rel (0) target = $region13
    $region12: #{convnet3_forward.1} parent=1 // pred_region
      _
    $region13: #{convnet3_forward.1} parent=1 // pred_fallthru
      _
    %v15 = vld [vmem:[%s0] sm:$0xf]
    %v16 = vld [vmem:[%s1] sm:$0xff]
    %v17 = vld [vmem:[%s1 + $0x8] sm:$0xff]
    %v18 = vld [vmem:[%s1 + $0x10] sm:$0xff]
    %v19 = vld [vmem:[%s1 + $0x18] sm:$0xff]
    %v20 = vld [vmem:[%s1 + $0x20] sm:$0xff]
    %v21 = vld [vmem:[%s1 + $0x28] sm:$0xff]
    %v22 = vld [vmem:[%s1 + $0x30] sm:$0xff]
    %v23 = vld [vmem:[%s1 + $0x38] sm:$0xff]
    %v24 = vld [vmem:[%s1 + $0x40] sm:$0xff]
    %v25 = vld [vmem:[%s1 + $0x48] sm:$0xff]
    %v26 = vld [vmem:[%s1 + $0x50] sm:$0xff]
    %v27 = vld [vmem:[%s1 + $0x58] sm:$0xff]
    %v28 = vld [vmem:[%s1 + $0x60] sm:$0xff]
    %v29 = vld [vmem:[%s1 + $0x68] sm:$0xff]
    %v30 = vld [vmem:[%s1 + $0x70] sm:$0xff]
    %v31 = vld [vmem:[%s1 + $0x78] sm:$0xff]
    %v32 = vld [vmem:[%s1 + $0x80] sm:$0xff]
    %v33 = vld [vmem:[%s1 + $0x88] sm:$0xff]
    %v34 = vld [vmem:[%s1 + $0x90] sm:$0xff]
    %v35 = vld [vmem:[%s1 + $0x98] sm:$0xff]
    %v36 = vld [vmem:[%s1 + $0xa0] sm:$0xff]
    %v37 = vld [vmem:[%s1 + $0xa8] sm:$0xff]
    %v38 = vld [vmem:[%s1 + $0xb0] sm:$0xff]
    %v39 = vld [vmem:[%s1 + $0xb8] sm:$0xff]
    %v40 = vld [vmem:[%s1 + $0xc0] sm:$0xff]
    %v41 = vld [vmem:[%s1 + $0xc8] sm:$0xff]
    %v42 = vld [vmem:[%s1 + $0xd0] sm:$0xff]
    %v43 = vld [vmem:[%s1 + $0xd8] sm:$0xff]
    %v44 = vld [vmem:[%s1 + $0xe0] sm:$0xff]
    %v45 = vld [vmem:[%s1 + $0xe8] sm:$0xff]
    %v46 = vld [vmem:[%s1 + $0xf0] sm:$0xff]
    %v47 = vld [vmem:[%s1 + $0xf8] sm:$0xff]
    %v48 = vld [vmem:[%s2] sm:$0x1]
    %v50 = vlaneseq
    %v51 = vshrl.u32 %v50, 7
    %v52 = vsub.s32 0, %v51
    %v53 = vrot.slane %v48, %v52
    %v57 = vunpack.c.l.s4 1983009808
    %v58 = vunpack.c.0.s8 %v57
    %v59 = vlaneseq
    %v60 = vshrl.u32 %v59, 7
    %v61 = vsub.s32 %v58, %v60
    %v62 = vrot.slane %v15, %v61
    %v63 = vcombine.high %v62, %v62
    %66 = vmatprep.subr.mxu0 0.0
    %67 = vmatpush1.msra.mxu0 %v31
    %68 = vmatprep.subr.mxu0 0.0
    %69 = vmatpush1.msra.mxu0 %v30
    %70 = vmatprep.subr.mxu0 0.0
    %71 = vmatpush1.msra.mxu0 %v29
    %72 = vmatprep.subr.mxu0 0.0
    %73 = vmatpush1.msra.mxu0 %v28
    %74 = vmatprep.subr.mxu0 0.0
    %75 = vmatpush1.msra.mxu0 %v27
    %76 = vmatprep.subr.mxu0 0.0
    %77 = vmatpush1.msra.mxu0 %v26
    %78 = vmatprep.subr.mxu0 0.0
    %79 = vmatpush1.msra.mxu0 %v25
    %80 = vmatprep.subr.mxu0 0.0
    %81 = vmatpush1.msra.mxu0 %v24
    %82 = vmatprep.subr.mxu0 0.0
    %83 = vmatpush1.msra.mxu0 %v23
    %84 = vmatprep.subr.mxu0 0.0
    %85 = vmatpush1.msra.mxu0 %v22
    %86 = vmatprep.subr.mxu0 0.0
    %87 = vmatpush1.msra.mxu0 %v21
    %88 = vmatprep.subr.mxu0 0.0
    %89 = vmatpush1.msra.mxu0 %v20
    %90 = vmatprep.subr.mxu0 0.0
    %91 = vmatpush1.msra.mxu0 %v19
    %92 = vmatprep.subr.mxu0 0.0
    %93 = vmatpush1.msra.mxu0 %v18
    %94 = vmatprep.subr.mxu0 0.0
    %95 = vmatpush1.msra.mxu0 %v17
    %96 = vmatprep.subr.mxu0 0.0
    %97 = vmatpush1.msra.mxu0 %v16
    %98 = vmatprep.subr.mxu0 0.0
    %99 = vmatpush2.msra.mxu0 %v47
    %100 = vmatprep.subr.mxu0 0.0
    %101 = vmatpush2.msra.mxu0 %v46
    %102 = vmatprep.subr.mxu0 0.0
    %103 = vmatpush2.msra.mxu0 %v45
    %104 = vmatprep.subr.mxu0 0.0
    %105 = vmatpush2.msra.mxu0 %v44
    %106 = vmatprep.subr.mxu0 0.0
    %107 = vmatpush2.msra.mxu0 %v43
    %108 = vmatprep.subr.mxu0 0.0
    %109 = vmatpush2.msra.mxu0 %v42
    %110 = vmatprep.subr.mxu0 0.0
    %111 = vmatpush2.msra.mxu0 %v41
    %112 = vmatprep.subr.mxu0 0.0
    %113 = vmatpush2.msra.mxu0 %v40
    %114 = vmatprep.subr.mxu0 0.0
    %115 = vmatpush2.msra.mxu0 %v39
    %116 = vmatprep.subr.mxu0 0.0
    %117 = vmatpush2.msra.mxu0 %v38
    %118 = vmatprep.subr.mxu0 0.0
    %119 = vmatpush2.msra.mxu0 %v37
    %120 = vmatprep.subr.mxu0 0.0
    %121 = vmatpush2.msra.mxu0 %v36
    %122 = vmatprep.subr.mxu0 0.0
    %123 = vmatpush2.msra.mxu0 %v35
    %124 = vmatprep.subr.mxu0 0.0
    %125 = vmatpush2.msra.mxu0 %v34
    %126 = vmatprep.subr.mxu0 0.0
    %127 = vmatpush2.msra.mxu0 %v33
    %128 = vmatprep.subr.mxu0 0.0
    %129 = vmatpush2.msra.mxu0 %v32
    %130 = vmatprep.mubr.f32.mxu0 %v63
    %131 = vmatmul.mubr.f32.gmra.mxu0 %v62
    %v132 = vpop.f32.mrf.mxu0
    %v133 = vadd.f32 %v53, %v132
    %v134 = vpop.f32.mrf.mxu0
    %135 = vdwg.mxu0
    %vm136 = vcmask 74752
    %137 = vst.msk [vmem:[#allocation2] sm:$0x3] %vm136, %v133
    // Predicated region
    $region14: #{convnet3_forward.1} parent=1 // pred_check
      _
    $region15: #{convnet3_forward.1} parent=1 // pred_check_branch
      %139 = sbr.rel (0) target = $region17
    $region16: #{convnet3_forward.1} parent=1 // pred_region
      %s141 = ssub.s32 32, 32
      %142 = vsyncadd [#allocation3], %s141
      %s144 = sshll.u32 [#allocation2], 4
      %s145 = int_to_ptr.vmem [resolvable:$true] %s144
      %147 = dma.vmem_to_hbm [thread:$0]  %s145, 32, %s3, [#allocation3]
    $region17: #{convnet3_forward.1} parent=1 // pred_fallthru
      _
    // Predicated region
    $region18: #{convnet3_forward.1} parent=1 // pred_check
      _
    $region19: #{convnet3_forward.1} parent=1 // pred_check_branch
      %149 = sbr.rel (0) target = $region21
    $region20: #{convnet3_forward.1} parent=1 // pred_region
      %150 = dma.done [#allocation3], 32
    $region21: #{convnet3_forward.1} parent=1 // pred_fallthru
      _
    %151 = vsyncpa [#allocation3], 1

</llo_original>
